<compile_context>
chip_gen: v5e
topology: v5e:2x2
jax: 0.10.0
libtpu: 0.0.40
codegen_flags: <defaults>
</compile_context>

<pallas_src>
import functools

import numpy as np
import jax
import jax.numpy as jnp
from jax.experimental import pallas as pl
from jax.experimental.pallas import tpu as pltpu


def _bicubic_weight_matrix(in_size: int, out_size: int) -> np.ndarray:
    """Dense (out_size, in_size) bicubic interpolation matrix (PyTorch A=-0.75).

    Built with numpy so it is a host-side constant: no per-call device scatter
    ops, and under jit it is baked straight into the executable.
    """
    A = -0.75
    j = np.arange(out_size, dtype=np.float64)
    src = (j + 0.5) * (float(in_size) / float(out_size)) - 0.5
    i0 = np.floor(src)
    t = src - i0

    def cubic1(x):  # |x| <= 1
        return ((A + 2.0) * x - (A + 3.0)) * x * x + 1.0

    def cubic2(x):  # 1 < |x| < 2
        return ((A * x - 5.0 * A) * x + 8.0 * A) * x - 4.0 * A

    w = np.stack(
        [cubic2(t + 1.0), cubic1(t), cubic1(1.0 - t), cubic2(2.0 - t)], axis=1
    )  # (out, 4)
    idx = np.clip(
        i0.astype(np.int64)[:, None] + np.arange(-1, 3, dtype=np.int64)[None, :],
        0, in_size - 1,
    )  # (out, 4) — border-replicate clamping of the 4 taps
    W = np.zeros((out_size, in_size), np.float64)
    np.add.at(W, (np.arange(out_size)[:, None], idx), w)
    return W.astype(np.float32)


def _padded_weights(H, W, max_size, new_h, new_w, top, left, compute_dtype):
    """Weight matrices with the output padding folded in (zero rows/cols)."""
    wh = _bicubic_weight_matrix(H, new_h)          # (new_h, H)
    ww = _bicubic_weight_matrix(W, new_w)          # (new_w, W)
    wh_pad = np.zeros((max_size, H), np.float32)
    wh_pad[top:top + new_h, :] = wh                # (max_size, H)
    wwt_pad = np.zeros((W, max_size), np.float32)
    wwt_pad[:, left:left + new_w] = ww.T           # (W, max_size)
    return (jnp.asarray(wh_pad, dtype=compute_dtype),
            jnp.asarray(wwt_pad, dtype=compute_dtype))


def _resize_pad_kernel(
    x_ref, wh_ref, wwt_ref, o_ref, *, row_first, fill, top, left, new_h, new_w,
    compute_dtype,
):
    # x_ref:   (B, H, W)                a batch of image planes
    # wh_ref:  (max_size, H)            row-resize matrix, padding rows zeroed
    # wwt_ref: (W, max_size)            col-resize matrix (transposed), padding cols zeroed
    # o_ref:   (B, max_size, max_size)
    max_size = o_ref.shape[-1]
    planes = x_ref.shape[0]

    wh = wh_ref[...]    # stays resident across the plane loop
    wwt = wwt_ref[...]

    if fill != 0.0:
        rows = jax.lax.broadcasted_iota(jnp.int32, (max_size, max_size), 0)
        cols = jax.lax.broadcasted_iota(jnp.int32, (max_size, max_size), 1)
        in_region = (
            (rows >= top) & (rows < top + new_h)
            & (cols >= left) & (cols < left + new_w)
        )
        fill_val = jnp.float32(fill)

    # Static unroll over the plane batch: back-to-back MXU matmuls with the
    # (small) weight operands kept resident; each result is stored directly to
    # o_ref as a full lane-dense (max_size, max_size) tile.
    for b in range(planes):
        xb = x_ref[b].astype(compute_dtype)                                   # (H, W)
        if row_first:   # contract H first (cheaper when H >= W)
            t = jnp.dot(wh, xb, preferred_element_type=jnp.float32)           # (M, W)
            res = jnp.dot(t.astype(compute_dtype), wwt,
                          preferred_element_type=jnp.float32)                 # (M, M)
        else:           # contract W first (cheaper when W > H)
            t = jnp.dot(xb, wwt, preferred_element_type=jnp.float32)          # (H, M)
            res = jnp.dot(wh, t.astype(compute_dtype),
                          preferred_element_type=jnp.float32)                 # (M, M)
        if fill != 0.0:
            res = jnp.where(in_region, res, fill_val)
        o_ref[b] = res.astype(o_ref.dtype)


def _pick_plane_batch(nc, plane_in_bytes, plane_out_bytes, extra_bytes, budget):
    """Largest divisor of nc whose (double-buffered) block fits the VMEM budget,
    preferring >= 2 grid steps so v7x can use both TensorCores."""
    best = 1
    for b in range(1, nc + 1):
        if nc % b != 0:
            continue
        vmem = 2 * b * (plane_in_bytes + plane_out_bytes) + extra_bytes
        steps = nc // b
        if vmem <= budget and (steps >= 2 or nc == 1):
            best = b
    return best


def resize_max_size(
    img: jnp.ndarray,
    max_size: int,
    fill: float = 0.0,
    *,
    compute_dtype=jnp.bfloat16,
    vmem_budget_bytes: int = 24 * 2**20,
) -> jnp.ndarray:
    """Pallas implementation of ResizeMaxSize.forward for NCHW float tensors."""
    N, C, H, W = img.shape
    scale = max_size / float(max(H, W))
    if scale == 1.0:
        return img

    new_h = int(round(H * scale))
    new_w = int(round(W * scale))
    pad_h = max_size - new_h
    pad_w = max_size - new_w
    top = pad_h // 2
    left = pad_w // 2

    # Padding folded into the weight matrices (zero rows/cols produce the pad).
    wh_pad, wwt_pad = _padded_weights(H, W, max_size, new_h, new_w, top, left,
                                      compute_dtype)

    # Resize (contract) the larger spatial dim first -> fewer MXU FLOPs.
    row_first = H >= W

    NC = N * C
    x = img.reshape(NC, H, W)

    in_item = jnp.dtype(img.dtype).itemsize
    cmp_item = jnp.dtype(compute_dtype).itemsize
    plane_in = H * W * in_item
    plane_out = max_size * max_size * in_item
    weight_bytes = (wh_pad.size + wwt_pad.size) * cmp_item
    inter_bytes = max(H, W) * max_size * (4 + cmp_item)  # one f32 intermediate + cast
    B = _pick_plane_batch(NC, plane_in, plane_out, weight_bytes + inter_bytes,
                          vmem_budget_bytes)
    grid = (NC // B,)

    needed = 2 * B * (plane_in + plane_out) + 2 * weight_bytes + inter_bytes
    vmem_limit = int(min(48 * 2**20, max(32 * 2**20, 2 * needed)))

    kernel = functools.partial(
        _resize_pad_kernel,
        row_first=row_first,
        fill=float(fill),
        top=top,
        left=left,
        new_h=new_h,
        new_w=new_w,
        compute_dtype=compute_dtype,
    )

    out = pl.pallas_call(
        kernel,
        out_shape=jax.ShapeDtypeStruct((NC, max_size, max_size), img.dtype),
        grid=grid,
        in_specs=[
            pl.BlockSpec((B, H, W), lambda i: (i, 0, 0)),
            pl.BlockSpec((max_size, H), lambda i: (0, 0)),
            pl.BlockSpec((W, max_size), lambda i: (0, 0)),
        ],
        out_specs=pl.BlockSpec((B, max_size, max_size), lambda i: (i, 0, 0)),
        compiler_params=pltpu.CompilerParams(
            dimension_semantics=("parallel",),
            vmem_limit_bytes=vmem_limit,
        ),
    )(x, wh_pad, wwt_pad)

    return out.reshape(N, C, max_size, max_size)


def _reference(img, max_size, fill=0.0):
    """Pure-JAX f32 reference using the same folded weight matrices (fill==0)."""
    assert fill == 0.0
    N, C, H, W = img.shape
    scale = max_size / float(max(H, W))
    if scale == 1.0:
        return img
    new_h = int(round(H * scale))
    new_w = int(round(W * scale))
    top = (max_size - new_h) // 2
    left = (max_size - new_w) // 2
    wh_pad, wwt_pad = _padded_weights(H, W, max_size, new_h, new_w, top, left,
                                      jnp.float32)
    x = img.astype(jnp.float32)
    out = jnp.einsum("mh,nchw,wk->ncmk", wh_pad, x, wwt_pad)
    return out.astype(img.dtype)


if __name__ == "__main__":
    key = jax.random.PRNGKey(0)
    key1, key2 = jax.random.split(key)

    # Case 1: H > W downscale (exercises the H-contraction-first branch).
    N, C, H, W = 2, 4, 16, 12
    MAX_SIZE = 8
    x = jax.random.uniform(key1, (N, C, H, W), dtype=jnp.float32)
    ref = _reference(x, MAX_SIZE, fill=0.0)

    # f32 compute path: should match the reference tightly.
    out_f32 = jax.block_until_ready(
        resize_max_size(x, MAX_SIZE, fill=0.0, compute_dtype=jnp.float32))
    assert out_f32.shape == (N, C, MAX_SIZE, MAX_SIZE), out_f32.shape
    assert out_f32.dtype == x.dtype, out_f32.dtype
    assert jnp.allclose(out_f32, ref, atol=1e-5, rtol=1e-5)

    # Default bf16 compute path: small drift allowed, padding must be exact.
    out = jax.block_until_ready(resize_max_size(x, MAX_SIZE, fill=0.0))
    assert out.shape == (N, C, MAX_SIZE, MAX_SIZE), out.shape
    assert out.dtype == x.dtype, out.dtype
    # pad_w = 2 -> one padded column on each side must equal the fill value (0).
    assert jnp.allclose(out[..., :, 0], 0.0) and jnp.allclose(out[..., :, -1], 0.0)
    assert jnp.max(jnp.abs(out - ref)) < 3e-2

    # Case 2: W > H downscale (exercises the W-contraction-first branch).
    x2 = jax.random.uniform(key2, (2, 3, 12, 16), dtype=jnp.float32)
    ref2 = _reference(x2, MAX_SIZE, fill=0.0)
    out2 = jax.block_until_ready(
        resize_max_size(x2, MAX_SIZE, fill=0.0, compute_dtype=jnp.float32))
    assert out2.shape == (2, 3, MAX_SIZE, MAX_SIZE), out2.shape
    assert jnp.allclose(out2, ref2, atol=1e-4, rtol=1e-4)
    # pad_h = 2 -> first and last output rows are padding (exact zeros).
    assert jnp.allclose(out2[..., 0, :], 0.0) and jnp.allclose(out2[..., -1, :], 0.0)

    # Case 3: non-zero fill (exercises the in-kernel fill mask branch).
    out_fill = jax.block_until_ready(
        resize_max_size(x, MAX_SIZE, fill=1.0, compute_dtype=jnp.float32))
    assert jnp.allclose(out_fill[..., :, 0], 1.0)
    assert jnp.allclose(out_fill[..., :, -1], 1.0)
    assert jnp.allclose(out_fill[..., :, 1:-1], ref[..., :, 1:-1],
                        atol=1e-4, rtol=1e-4)

    print("KERNEL_OK")
</pallas_src>

<mosaic_0001>
module attributes {stable_mosaic.version = 11 : i64} {
  func.func @_resize_pad_kernel(%arg0: i32, %arg1: memref<4x16x12xf32, #tpu.memory_space<vmem>>, %arg2: memref<8x16xf32, #tpu.memory_space<vmem>>, %arg3: memref<12x8xf32, #tpu.memory_space<vmem>>, %arg4: memref<4x8x8xf32, #tpu.memory_space<vmem>>) attributes {dimension_semantics = [#tpu.dimension_semantics<parallel>], iteration_bounds = array<i64: 2>, scalar_prefetch = 0 : i64, scratch_operands = 0 : i64, tpu.core_type = #tpu.core_type<tc>, window_params = [{transform_indices = @transform_0, window_bounds = array<i64: 4, 16, 12>}, {pipeline_mode = #tpu.pipeline_mode<synchronous>, transform_indices = @transform_1, window_bounds = array<i64: 8, 16>}, {pipeline_mode = #tpu.pipeline_mode<synchronous>, transform_indices = @transform_2, window_bounds = array<i64: 12, 8>}, {transform_indices = @transform_3, window_bounds = array<i64: 4, 8, 8>}]} {
    %c0 = arith.constant 0 : index
    %c0_0 = arith.constant 0 : index
    %0 = vector.load %arg2[%c0, %c0_0] : memref<8x16xf32, #tpu.memory_space<vmem>>, vector<8x16xf32>
    %c0_1 = arith.constant 0 : index
    %c0_2 = arith.constant 0 : index
    %1 = vector.load %arg3[%c0_1, %c0_2] : memref<12x8xf32, #tpu.memory_space<vmem>>, vector<12x8xf32>
    %c0_3 = arith.constant 0 : index
    %c0_4 = arith.constant 0 : index
    %c0_5 = arith.constant 0 : index
    %2 = vector.load %arg1[%c0_3, %c0_4, %c0_5] : memref<4x16x12xf32, #tpu.memory_space<vmem>>, vector<1x16x12xf32>
    %3 = vector.shape_cast %2 : vector<1x16x12xf32> to vector<16x12xf32>
    %cst = arith.constant dense<0.000000e+00> : vector<8x12xf32>
    %4 = tpu.matmul %0, %3, %cst {dimension_numbers = #tpu.dot_dimension_numbers<[1], [0], [0], [1], [0, 0, 1, 1], [], []>} : vector<8x16xf32>, vector<16x12xf32>, vector<8x12xf32> -> vector<8x12xf32>
    %cst_6 = arith.constant dense<0.000000e+00> : vector<8x8xf32>
    %5 = tpu.matmul %4, %1, %cst_6 {dimension_numbers = #tpu.dot_dimension_numbers<[1], [0], [0], [1], [0, 0, 1, 1], [], []>} : vector<8x12xf32>, vector<12x8xf32>, vector<8x8xf32> -> vector<8x8xf32>
    %c0_7 = arith.constant 0 : index
    %c0_8 = arith.constant 0 : index
    %c0_9 = arith.constant 0 : index
    %6 = vector.load %arg4[%c0_7, %c0_8, %c0_9] : memref<4x8x8xf32, #tpu.memory_space<vmem>>, vector<1x8x8xf32>
    %7 = vector.shape_cast %6 : vector<1x8x8xf32> to vector<8x8xf32>
    %8 = vector.shape_cast %5 : vector<8x8xf32> to vector<1x8x8xf32>
    tpu.vector_store %arg4[%c0_7, %c0_8, %c0_9], %8 {strides = array<i32>} : memref<4x8x8xf32, #tpu.memory_space<vmem>>, vector<1x8x8xf32>,
    %c1 = arith.constant 1 : index
    %c0_10 = arith.constant 0 : index
    %c0_11 = arith.constant 0 : index
    %9 = vector.load %arg1[%c1, %c0_10, %c0_11] : memref<4x16x12xf32, #tpu.memory_space<vmem>>, vector<1x16x12xf32>
    %10 = vector.shape_cast %9 : vector<1x16x12xf32> to vector<16x12xf32>
    %cst_12 = arith.constant dense<0.000000e+00> : vector<8x12xf32>
    %11 = tpu.matmul %0, %10, %cst_12 {dimension_numbers = #tpu.dot_dimension_numbers<[1], [0], [0], [1], [0, 0, 1, 1], [], []>} : vector<8x16xf32>, vector<16x12xf32>, vector<8x12xf32> -> vector<8x12xf32>
    %cst_13 = arith.constant dense<0.000000e+00> : vector<8x8xf32>
    %12 = tpu.matmul %11, %1, %cst_13 {dimension_numbers = #tpu.dot_dimension_numbers<[1], [0], [0], [1], [0, 0, 1, 1], [], []>} : vector<8x12xf32>, vector<12x8xf32>, vector<8x8xf32> -> vector<8x8xf32>
    %c1_14 = arith.constant 1 : index
    %c0_15 = arith.constant 0 : index
    %c0_16 = arith.constant 0 : index
    %13 = vector.load %arg4[%c1_14, %c0_15, %c0_16] : memref<4x8x8xf32, #tpu.memory_space<vmem>>, vector<1x8x8xf32>
    %14 = vector.shape_cast %13 : vector<1x8x8xf32> to vector<8x8xf32>
    %15 = vector.shape_cast %12 : vector<8x8xf32> to vector<1x8x8xf32>
    tpu.vector_store %arg4[%c1_14, %c0_15, %c0_16], %15 {strides = array<i32>} : memref<4x8x8xf32, #tpu.memory_space<vmem>>, vector<1x8x8xf32>,
    %c2 = arith.constant 2 : index
    %c0_17 = arith.constant 0 : index
    %c0_18 = arith.constant 0 : index
    %16 = vector.load %arg1[%c2, %c0_17, %c0_18] : memref<4x16x12xf32, #tpu.memory_space<vmem>>, vector<1x16x12xf32>
    %17 = vector.shape_cast %16 : vector<1x16x12xf32> to vector<16x12xf32>
    %cst_19 = arith.constant dense<0.000000e+00> : vector<8x12xf32>
    %18 = tpu.matmul %0, %17, %cst_19 {dimension_numbers = #tpu.dot_dimension_numbers<[1], [0], [0], [1], [0, 0, 1, 1], [], []>} : vector<8x16xf32>, vector<16x12xf32>, vector<8x12xf32> -> vector<8x12xf32>
    %cst_20 = arith.constant dense<0.000000e+00> : vector<8x8xf32>
    %19 = tpu.matmul %18, %1, %cst_20 {dimension_numbers = #tpu.dot_dimension_numbers<[1], [0], [0], [1], [0, 0, 1, 1], [], []>} : vector<8x12xf32>, vector<12x8xf32>, vector<8x8xf32> -> vector<8x8xf32>
    %c2_21 = arith.constant 2 : index
    %c0_22 = arith.constant 0 : index
    %c0_23 = arith.constant 0 : index
    %20 = vector.load %arg4[%c2_21, %c0_22, %c0_23] : memref<4x8x8xf32, #tpu.memory_space<vmem>>, vector<1x8x8xf32>
    %21 = vector.shape_cast %20 : vector<1x8x8xf32> to vector<8x8xf32>
    %22 = vector.shape_cast %19 : vector<8x8xf32> to vector<1x8x8xf32>
    tpu.vector_store %arg4[%c2_21, %c0_22, %c0_23], %22 {strides = array<i32>} : memref<4x8x8xf32, #tpu.memory_space<vmem>>, vector<1x8x8xf32>,
    %c3 = arith.constant 3 : index
    %c0_24 = arith.constant 0 : index
    %c0_25 = arith.constant 0 : index
    %23 = vector.load %arg1[%c3, %c0_24, %c0_25] : memref<4x16x12xf32, #tpu.memory_space<vmem>>, vector<1x16x12xf32>
    %24 = vector.shape_cast %23 : vector<1x16x12xf32> to vector<16x12xf32>
    %cst_26 = arith.constant dense<0.000000e+00> : vector<8x12xf32>
    %25 = tpu.matmul %0, %24, %cst_26 {dimension_numbers = #tpu.dot_dimension_numbers<[1], [0], [0], [1], [0, 0, 1, 1], [], []>} : vector<8x16xf32>, vector<16x12xf32>, vector<8x12xf32> -> vector<8x12xf32>
    %cst_27 = arith.constant dense<0.000000e+00> : vector<8x8xf32>
    %26 = tpu.matmul %25, %1, %cst_27 {dimension_numbers = #tpu.dot_dimension_numbers<[1], [0], [0], [1], [0, 0, 1, 1], [], []>} : vector<8x12xf32>, vector<12x8xf32>, vector<8x8xf32> -> vector<8x8xf32>
    %c3_28 = arith.constant 3 : index
    %c0_29 = arith.constant 0 : index
    %c0_30 = arith.constant 0 : index
    %27 = vector.load %arg4[%c3_28, %c0_29, %c0_30] : memref<4x8x8xf32, #tpu.memory_space<vmem>>, vector<1x8x8xf32>
    %28 = vector.shape_cast %27 : vector<1x8x8xf32> to vector<8x8xf32>
    %29 = vector.shape_cast %26 : vector<8x8xf32> to vector<1x8x8xf32>
    tpu.vector_store %arg4[%c3_28, %c0_29, %c0_30], %29 {strides = array<i32>} : memref<4x8x8xf32, #tpu.memory_space<vmem>>, vector<1x8x8xf32>,
    return
  }
  func.func @transform_0(%arg0: i32) -> (i32, i32, i32) {
    %c0_i32 = arith.constant 0 : i32
    %c0_i32_0 = arith.constant 0 : i32
    %c0_i32_1 = arith.constant 0 : i32
    return %arg0, %c0_i32, %c0_i32_0 : i32, i32, i32
  }
  func.func @transform_1(%arg0: i32) -> (i32, i32) {
    %c0_i32 = arith.constant 0 : i32
    %c0_i32_0 = arith.constant 0 : i32
    %c0_i32_1 = arith.constant 0 : i32
    return %c0_i32, %c0_i32_0 : i32, i32
  }
  func.func @transform_2(%arg0: i32) -> (i32, i32) {
    %c0_i32 = arith.constant 0 : i32
    %c0_i32_0 = arith.constant 0 : i32
    %c0_i32_1 = arith.constant 0 : i32
    return %c0_i32, %c0_i32_0 : i32, i32
  }
  func.func @transform_3(%arg0: i32) -> (i32, i32, i32) {
    %c0_i32 = arith.constant 0 : i32
    %c0_i32_0 = arith.constant 0 : i32
    %c0_i32_1 = arith.constant 0 : i32
    return %arg0, %c0_i32, %c0_i32_0 : i32, i32, i32
  }
}

</mosaic_0001>

<llo_original>
// kernel: tpu_custom_call.1
$region0: #{tpu_custom_call.1}
  #allocation0 [shape = 'u32[]', space=smem, size = 0x4, offset = 0x4, fixed_abs, tag = 'smem constant byte address 0x4 - core index']
  #allocation1 [shape = 'u32[72,128]{1,0:T(1,128)}', space=vmem, size = 0x9000, scoped, tag = 'internal scratch']
  %s0 = inlined_call_operand.vmem [shape: f32[8,16,12], index: 0, kind: input, shape index: {}]
  %s1 = inlined_call_operand.vmem [shape: f32[8,16], index: 1, kind: input, shape index: {}]
  %s2 = inlined_call_operand.vmem [shape: f32[12,8], index: 2, kind: input, shape index: {}]
  %s3 = inlined_call_operand.hbm [shape: f32[8,8,8], index: 3, kind: output, shape index: {}]
  %s4 = sld [smem:[#allocation0]]
  $region45: #{tpu_custom_call.1} parent=0
    _
  %s6 = ssub.s32 1, %s4
  %s7 = scalar_select 0, %s6, %s4
  $region1: #{tpu_custom_call.1} parent=0
    #allocation2 [shape = 'u8[32768]{0}', space=vmem, size = 0x8000, scoped, tag = 'output window, operand 0']
    #allocation3 [shape = 's32[2]{0}', space=sflag, size = 0x8, scoped, tag = 'scoped memory for tpu_custom_call.1']
    %8 = vsyncpa [#allocation3], 0
    %s9 = scalar_lea.sflag [#allocation3], 1
    %10 = vsyncpa %s9, 0
    loop: start=0, step=1, limit=4
    $region2: #{tpu_custom_call.1} parent=1 // loop_pre_header
      _
    $region3: #{tpu_custom_call.1} parent=1 // loop_header
      %s12 = sphi 0, %s16
      %p13 = scmp.ge.s32.totalorder %s12, 4
      %s22 = sphi 0, %s24
      %s25 = sphi 0, %s22
      %s26 = sphi 0, %s25
      %s42 = sphi 0, %s26
      %s46 = sphi 0, %s46
      %s48 = sphi 0, %s46
      %s49 = sphi 0, %s48
      %s63 = sphi 0, %s49
      %s67 = sphi 0, %s67
      %s69 = sphi 0, %s67
      %s70 = sphi 0, %s69
      %s84 = sphi 0, %s70
      %s90 = sphi 0, %s92
      %s93 = sphi 0, %s90
      %s94 = sphi 0, %s93
      %s110 = sphi 0, %s94
    $region4: #{tpu_custom_call.1} parent=1 // loop_header_branch
      %15 = sbr.rel (%p13) target = $region8
    $region5: #{tpu_custom_call.1} parent=1 // loop_body
      %s17 = ssub.s32 %s12, 1
      %s18 = ssub.s32 %s12, 2
      %s19 = sadd.s32 %s12, 1
      %s20 = ssub.s32 %s12, %s19
      %p21 = scmp.eq.s32.totalorder %s20, 0
      %s23 = sadd.s32 %s22, 1
      %s24 = scalar_select %p21, %s22, %s23
      %p27 = pneg %p21
      %p28 = scmp.eq.s32.totalorder %s12, 1
      %p29 = por %p27, %p28
      %p30 = scmp.ne.s32.totalorder %s22, %s25
      %p31 = scmp.eq.s32.totalorder %s12, 0
      %p32 = por %p30, %p31
      %p33 = scmp.ne.s32.totalorder %s22, %s25
      %p34 = scmp.eq.s32.totalorder %s17, 1
      %p35 = por %p33, %p34
      %p36 = scmp.ne.s32.totalorder %s25, %s26
      %p37 = scmp.eq.s32.totalorder %s17, 0
      %p38 = por %p36, %p37
      %p39 = scmp.ne.s32.totalorder %s25, %s26
      %p40 = scmp.eq.s32.totalorder %s18, 1
      %p41 = por %p39, %p40
      %p43 = scmp.ne.s32.totalorder %s26, %s42
      %p44 = scmp.eq.s32.totalorder %s18, 0
      %p45 = por %p43, %p44
      %s47 = sadd.s32 %s46, 1
      %p50 = scmp.eq.s32.totalorder %s12, 1
      %p51 = scmp.ne.s32.totalorder %s46, %s48
      %p52 = scmp.eq.s32.totalorder %s12, 0
      %p53 = por %p51, %p52
      %p54 = scmp.ne.s32.totalorder %s46, %s48
      %p55 = scmp.eq.s32.totalorder %s17, 1
      %p56 = por %p54, %p55
      %p57 = scmp.ne.s32.totalorder %s48, %s49
      %p58 = scmp.eq.s32.totalorder %s17, 0
      %p59 = por %p57, %p58
      %p60 = scmp.ne.s32.totalorder %s48, %s49
      %p61 = scmp.eq.s32.totalorder %s18, 1
      %p62 = por %p60, %p61
      %p64 = scmp.ne.s32.totalorder %s49, %s63
      %p65 = scmp.eq.s32.totalorder %s18, 0
      %p66 = por %p64, %p65
      %s68 = sadd.s32 %s67, 1
      %p71 = scmp.eq.s32.totalorder %s12, 1
      %p72 = scmp.ne.s32.totalorder %s67, %s69
      %p73 = scmp.eq.s32.totalorder %s12, 0
      %p74 = por %p72, %p73
      %p75 = scmp.ne.s32.totalorder %s67, %s69
      %p76 = scmp.eq.s32.totalorder %s17, 1
      %p77 = por %p75, %p76
      %p78 = scmp.ne.s32.totalorder %s69, %s70
      %p79 = scmp.eq.s32.totalorder %s17, 0
      %p80 = por %p78, %p79
      %p81 = scmp.ne.s32.totalorder %s69, %s70
      %p82 = scmp.eq.s32.totalorder %s18, 1
      %p83 = por %p81, %p82
      %p85 = scmp.ne.s32.totalorder %s70, %s84
      %p86 = scmp.eq.s32.totalorder %s18, 0
      %p87 = por %p85, %p86
      %s88 = ssub.s32 %s12, %s19
      %p89 = scmp.eq.s32.totalorder %s88, 0
      %s91 = sadd.s32 %s90, 1
      %s92 = scalar_select %p89, %s90, %s91
      %p95 = pneg %p89
      %p96 = scmp.eq.s32.totalorder %s12, 1
      %p97 = por %p95, %p96
      %p98 = scmp.ne.s32.totalorder %s90, %s93
      %p99 = scmp.eq.s32.totalorder %s12, 0
      %p100 = por %p98, %p99
      %p101 = scmp.ne.s32.totalorder %s90, %s93
      %p102 = scmp.eq.s32.totalorder %s17, 1
      %p103 = por %p101, %p102
      %p104 = scmp.ne.s32.totalorder %s93, %s94
      %p105 = scmp.eq.s32.totalorder %s17, 0
      %p106 = por %p104, %p105
      %p107 = scmp.ne.s32.totalorder %s93, %s94
      %p108 = scmp.eq.s32.totalorder %s18, 1
      %p109 = por %p107, %p108
      %p111 = scmp.ne.s32.totalorder %s94, %s110
      %p112 = scmp.eq.s32.totalorder %s18, 0
      %p113 = por %p111, %p112
      %p114 = scmp.le.s32.totalorder 1, %s12
      %p115 = scmp.lt.s32.totalorder %s12, 3
      %p116 = pnand %p114, %p115
      %p117 = pneg %p116
      // Predicated region
      $region9: #{tpu_custom_call.1} parent=5 // pred_check
        _
      $region10: #{tpu_custom_call.1} parent=5 // pred_check_branch
        %119 = sbr.rel (%p116) target = $region12
      $region11: #{tpu_custom_call.1} parent=5 // pred_region
        %s120 = ssub.s32 %s12, 1
        // Predicated region
        $region13: #{tpu_custom_call.1} parent=11 // pred_check
          %p121 = pneg %p59
        $region14: #{tpu_custom_call.1} parent=11 // pred_check_branch
          %123 = sbr.rel (%p121) target = $region16
        $region15: #{tpu_custom_call.1} parent=11 // pred_region
          _
        $region16: #{tpu_custom_call.1} parent=11 // pred_fallthru
          _
        // Predicated region
        $region17: #{tpu_custom_call.1} parent=11 // pred_check
          %p124 = pneg %p80
        $region18: #{tpu_custom_call.1} parent=11 // pred_check_branch
          %126 = sbr.rel (%p124) target = $region20
        $region19: #{tpu_custom_call.1} parent=11 // pred_region
          _
        $region20: #{tpu_custom_call.1} parent=11 // pred_fallthru
          _
      $region12: #{tpu_custom_call.1} parent=5 // pred_fallthru
        _
      %p127 = scmp.lt.s32.totalorder %s12, 2
      // Predicated region
      $region21: #{tpu_custom_call.1} parent=5 // pred_check
        %p128 = pneg %p127
      $region22: #{tpu_custom_call.1} parent=5 // pred_check_branch
        %130 = sbr.rel (%p128) target = $region24
      $region23: #{tpu_custom_call.1} parent=5 // pred_region
        // Predicated region
        $region25: #{tpu_custom_call.1} parent=23 // pred_check
          %p131 = pneg %p32
        $region26: #{tpu_custom_call.1} parent=23 // pred_check_branch
          %133 = sbr.rel (%p131) target = $region28
        $region27: #{tpu_custom_call.1} parent=23 // pred_region
          %s134 = smul.u32 4, %s12
          %p135 = scmp.lt.s32.totalorder %s134, 7
          %s136 = scalar_select %p135, %s134, 7
          %s137 = smul.addr %s136, 2
          %s138 = smul.addr %s137, 8
          %s139 = scalar_lea.vmem %s0, %s138
          %s140 = smul.u32 4, %s12
        $region28: #{tpu_custom_call.1} parent=23 // pred_fallthru
          _
      $region24: #{tpu_custom_call.1} parent=5 // pred_fallthru
        _
      %p141 = scmp.le.s32.totalorder 1, %s12
      %p142 = scmp.lt.s32.totalorder %s12, 3
      %p143 = pnand %p141, %p142
      %p144 = pneg %p143
      // Predicated region
      $region29: #{tpu_custom_call.1} parent=5 // pred_check
        _
      $region30: #{tpu_custom_call.1} parent=5 // pred_check_branch
        %146 = sbr.rel (%p143) target = $region32
      $region31: #{tpu_custom_call.1} parent=5 // pred_region
        %s147 = ssub.s32 %s12, 1
        %s148 = smul.u32 4, %s17
        %p149 = scmp.lt.s32.totalorder %s148, 7
        %s150 = scalar_select %p149, %s148, 7
        %s151 = smul.addr %s150, 2
        %s152 = smul.addr %s151, 8
        %s153 = scalar_lea.vmem %s0, %s152
        %p154 = pneg %p38
        %p155 = pneg %p35
        %p156 = pneg %p59
        %p157 = pneg %p56
        %p158 = pneg %p80
        %p159 = pneg %p77
        %p160 = pneg %p106
        %p161 = pneg %p103
        %s162 = sand.u32 %s93, 1
        %s163 = scalar_lea.sflag [#allocation3], %s162
        %s164 = sand.u32 %s93, 1
        %s165 = smul.addr %s164, 32
        %s166 = scalar_lea.vmem [#allocation2], %s165
        %s167 = smul.u32 4, %s17
        %p168 = scmp.lt.s32.totalorder %s167, 7
        %s169 = scalar_select %p168, %s167, 7
        %s170 = smul.addr %s169, 2
        %s171 = smul.addr %s170, 8
        %s172 = scalar_lea.vmem %s0, %s171
        %s173 = smul.u32 4, %s17
        %s174 = smul.u32 4, %s17
        %v175 = vld [vmem:[%s1] sm:$0xff]
        %v176 = vld [vmem:[%s2] sm:$0xff]
        %v177 = vld [vmem:[%s2 + $0x8] sm:$0xf]
        %v178 = vld [vmem:[%s172] sm:$0xff]
        %v179 = vld [vmem:[%s172 + $0x8] sm:$0xff]
        %vm180 = vcmask 130048
        %v182 = vsel %vm180, %v175, 0
        %184 = vmatpush.msra.mxu0 0.0
        %185 = vmatpush.msra.mxu0 0.0
        %186 = vmatpush.msra.mxu0 0.0
        %187 = vmatpush.msra.mxu0 0.0
        %188 = vmatpush.msra.mxu0 0.0
        %189 = vmatpush.msra.mxu0 0.0
        %190 = vmatpush.msra.mxu0 0.0
        %191 = vmatpush.msra.mxu0 0.0
        %192 = vmatpush.msra.mxu0 0.0
        %193 = vmatpush.msra.mxu0 0.0
        %194 = vmatpush.msra.mxu0 0.0
        %195 = vmatpush.msra.mxu0 0.0
        %196 = vmatpush.msra.mxu0 0.0
        %197 = vmatpush.msra.mxu0 0.0
        %198 = vmatpush.msra.mxu0 %v179
        %199 = vmatpush.msra.mxu0 %v178
        %200 = vmatmul.f32.gmra.mxu0 %v182
        %v201 = vpop.f32.mrf.mxu0
        %v202 = vadd.f32 0.0, %v201
        %203 = vdwg.mxu0
        %vm204 = vcmask 97280
        %v206 = vsel %vm204, %v202, 0
        %vm208 = vcmask 1043456
        %v210 = vsel %vm208, %v177, 0
        %212 = vmatpush.msra.mxu0 0.0
        %213 = vmatpush.msra.mxu0 0.0
        %214 = vmatpush.msra.mxu0 0.0
        %215 = vmatpush.msra.mxu0 0.0
        %216 = vmatpush.msra.mxu0 0.0
        %217 = vmatpush.msra.mxu0 0.0
        %218 = vmatpush.msra.mxu0 0.0
        %219 = vmatpush.msra.mxu0 0.0
        %220 = vmatpush.msra.mxu0 0.0
        %221 = vmatpush.msra.mxu0 0.0
        %222 = vmatpush.msra.mxu0 0.0
        %223 = vmatpush.msra.mxu0 0.0
        %224 = vmatpush.msra.mxu0 0.0
        %225 = vmatpush.msra.mxu0 0.0
        %226 = vmatpush.msra.mxu0 %v210
        %227 = vmatpush.msra.mxu0 %v176
        %228 = vmatmul.f32.gmra.mxu0 %v206
        %v229 = vpop.f32.mrf.mxu0
        %v230 = vadd.f32 0.0, %v229
        %231 = vdwg.mxu0
        %vm232 = vcmask 64512
        %233 = vst.msk [vmem:[%s166] sm:$0xff] %vm232, %v230
        %s234 = scalar_lea.vmem %s172, 16
        %v235 = vld [vmem:[%s234] sm:$0xff]
        %v236 = vld [vmem:[%s234 + $0x8] sm:$0xff]
        %237 = vmatpush.msra.mxu0 0.0
        %238 = vmatpush.msra.mxu0 0.0
        %239 = vmatpush.msra.mxu0 0.0
        %240 = vmatpush.msra.mxu0 0.0
        %241 = vmatpush.msra.mxu0 0.0
        %242 = vmatpush.msra.mxu0 0.0
        %243 = vmatpush.msra.mxu0 0.0
        %244 = vmatpush.msra.mxu0 0.0
        %245 = vmatpush.msra.mxu0 0.0
        %246 = vmatpush.msra.mxu0 0.0
        %247 = vmatpush.msra.mxu0 0.0
        %248 = vmatpush.msra.mxu0 0.0
        %249 = vmatpush.msra.mxu0 0.0
        %250 = vmatpush.msra.mxu0 0.0
        %251 = vmatpush.msra.mxu0 %v236
        %252 = vmatpush.msra.mxu0 %v235
        %253 = vmatmul.f32.gmra.mxu0 %v182
        %v254 = vpop.f32.mrf.mxu0
        %v255 = vadd.f32 0.0, %v254
        %256 = vdwg.mxu0
        %v258 = vsel %vm204, %v255, 0
        %260 = vmatpush.msra.mxu0 0.0
        %261 = vmatpush.msra.mxu0 0.0
        %262 = vmatpush.msra.mxu0 0.0
        %263 = vmatpush.msra.mxu0 0.0
        %264 = vmatpush.msra.mxu0 0.0
        %265 = vmatpush.msra.mxu0 0.0
        %266 = vmatpush.msra.mxu0 0.0
        %267 = vmatpush.msra.mxu0 0.0
        %268 = vmatpush.msra.mxu0 0.0
        %269 = vmatpush.msra.mxu0 0.0
        %270 = vmatpush.msra.mxu0 0.0
        %271 = vmatpush.msra.mxu0 0.0
        %272 = vmatpush.msra.mxu0 0.0
        %273 = vmatpush.msra.mxu0 0.0
        %274 = vmatpush.msra.mxu0 %v210
        %275 = vmatpush.msra.mxu0 %v176
        %276 = vmatmul.f32.gmra.mxu0 %v258
        %v277 = vpop.f32.mrf.mxu0
        %v278 = vadd.f32 0.0, %v277
        %279 = vdwg.mxu0
        %s280 = scalar_lea.vmem %s166, 8 [#allocation2]
        %281 = vst.msk [vmem:[%s280] sm:$0xff] %vm232, %v278
        %s282 = scalar_lea.vmem %s172, 32
        %v283 = vld [vmem:[%s282] sm:$0xff]
        %v284 = vld [vmem:[%s282 + $0x8] sm:$0xff]
        %285 = vmatpush.msra.mxu0 0.0
        %286 = vmatpush.msra.mxu0 0.0
        %287 = vmatpush.msra.mxu0 0.0
        %288 = vmatpush.msra.mxu0 0.0
        %289 = vmatpush.msra.mxu0 0.0
        %290 = vmatpush.msra.mxu0 0.0
        %291 = vmatpush.msra.mxu0 0.0
        %292 = vmatpush.msra.mxu0 0.0
        %293 = vmatpush.msra.mxu0 0.0
        %294 = vmatpush.msra.mxu0 0.0
        %295 = vmatpush.msra.mxu0 0.0
        %296 = vmatpush.msra.mxu0 0.0
        %297 = vmatpush.msra.mxu0 0.0
        %298 = vmatpush.msra.mxu0 0.0
        %299 = vmatpush.msra.mxu0 %v284
        %300 = vmatpush.msra.mxu0 %v283
        %301 = vmatmul.f32.gmra.mxu0 %v182
        %v302 = vpop.f32.mrf.mxu0
        %v303 = vadd.f32 0.0, %v302
        %304 = vdwg.mxu0
        %v306 = vsel %vm204, %v303, 0
        %308 = vmatpush.msra.mxu0 0.0
        %309 = vmatpush.msra.mxu0 0.0
        %310 = vmatpush.msra.mxu0 0.0
        %311 = vmatpush.msra.mxu0 0.0
        %312 = vmatpush.msra.mxu0 0.0
        %313 = vmatpush.msra.mxu0 0.0
        %314 = vmatpush.msra.mxu0 0.0
        %315 = vmatpush.msra.mxu0 0.0
        %316 = vmatpush.msra.mxu0 0.0
        %317 = vmatpush.msra.mxu0 0.0
        %318 = vmatpush.msra.mxu0 0.0
        %319 = vmatpush.msra.mxu0 0.0
        %320 = vmatpush.msra.mxu0 0.0
        %321 = vmatpush.msra.mxu0 0.0
        %322 = vmatpush.msra.mxu0 %v210
        %323 = vmatpush.msra.mxu0 %v176
        %324 = vmatmul.f32.gmra.mxu0 %v306
        %v325 = vpop.f32.mrf.mxu0
        %v326 = vadd.f32 0.0, %v325
        %327 = vdwg.mxu0
        %s328 = scalar_lea.vmem %s166, 16 [#allocation2]
        %329 = vst.msk [vmem:[%s328] sm:$0xff] %vm232, %v326
        %s330 = scalar_lea.vmem %s172, 48
        %v331 = vld [vmem:[%s330] sm:$0xff]
        %v332 = vld [vmem:[%s330 + $0x8] sm:$0xff]
        %333 = vmatpush.msra.mxu0 0.0
        %334 = vmatpush.msra.mxu0 0.0
        %335 = vmatpush.msra.mxu0 0.0
        %336 = vmatpush.msra.mxu0 0.0
        %337 = vmatpush.msra.mxu0 0.0
        %338 = vmatpush.msra.mxu0 0.0
        %339 = vmatpush.msra.mxu0 0.0
        %340 = vmatpush.msra.mxu0 0.0
        %341 = vmatpush.msra.mxu0 0.0
        %342 = vmatpush.msra.mxu0 0.0
        %343 = vmatpush.msra.mxu0 0.0
        %344 = vmatpush.msra.mxu0 0.0
        %345 = vmatpush.msra.mxu0 0.0
        %346 = vmatpush.msra.mxu0 0.0
        %347 = vmatpush.msra.mxu0 %v332
        %348 = vmatpush.msra.mxu0 %v331
        %349 = vmatmul.f32.gmra.mxu0 %v182
        %v350 = vpop.f32.mrf.mxu0
        %v351 = vadd.f32 0.0, %v350
        %352 = vdwg.mxu0
        %v354 = vsel %vm204, %v351, 0
        %356 = vmatpush.msra.mxu0 0.0
        %357 = vmatpush.msra.mxu0 0.0
        %358 = vmatpush.msra.mxu0 0.0
        %359 = vmatpush.msra.mxu0 0.0
        %360 = vmatpush.msra.mxu0 0.0
        %361 = vmatpush.msra.mxu0 0.0
        %362 = vmatpush.msra.mxu0 0.0
        %363 = vmatpush.msra.mxu0 0.0
        %364 = vmatpush.msra.mxu0 0.0
        %365 = vmatpush.msra.mxu0 0.0
        %366 = vmatpush.msra.mxu0 0.0
        %367 = vmatpush.msra.mxu0 0.0
        %368 = vmatpush.msra.mxu0 0.0
        %369 = vmatpush.msra.mxu0 0.0
        %370 = vmatpush.msra.mxu0 %v210
        %371 = vmatpush.msra.mxu0 %v176
        %372 = vmatmul.f32.gmra.mxu0 %v354
        %v373 = vpop.f32.mrf.mxu0
        %v374 = vadd.f32 0.0, %v373
        %375 = vdwg.mxu0
        %s376 = scalar_lea.vmem %s166, 24 [#allocation2]
        %377 = vst.msk [vmem:[%s376] sm:$0xff] %vm232, %v374
        %s378 = sand.u32 %s93, 1
        %s379 = scalar_lea.sflag [#allocation3], %s378
        %s380 = sand.u32 %s93, 1
        %s381 = smul.addr %s380, 32
        %s382 = scalar_lea.vmem [#allocation2], %s381
        // Predicated region
        $region33: #{tpu_custom_call.1} parent=31 // pred_check
          %p383 = pneg %p103
        $region34: #{tpu_custom_call.1} parent=31 // pred_check_branch
          %385 = sbr.rel (%p383) target = $region36
        $region35: #{tpu_custom_call.1} parent=31 // pred_region
          %s386 = smul.u32 4, %s17
          %388 = vsyncadd %s379, 0
          %s389 = smul.addr %s386, 8
          %s390 = scalar_lea.hbm %s3, %s389
          %s391 = sshll.u32 %s382, 4
          %s392 = int_to_ptr.vmem [resolvable:$true] %s391
          %s393 = sshll.u32 %s390, 4
          %s394 = int_to_ptr.hbm [resolvable:$true] %s393
          %399 = dma.vmem_to_hbm [thread:$0]  %s392, 512, %s394, %s379, 128, 128, 8
        $region36: #{tpu_custom_call.1} parent=31 // pred_fallthru
          _
      $region32: #{tpu_custom_call.1} parent=5 // pred_fallthru
        _
      %p400 = scmp.le.s32.totalorder 2, %s12
      // Predicated region
      $region37: #{tpu_custom_call.1} parent=5 // pred_check
        %p401 = pneg %p400
      $region38: #{tpu_custom_call.1} parent=5 // pred_check_branch
        %403 = sbr.rel (%p401) target = $region40
      $region39: #{tpu_custom_call.1} parent=5 // pred_region
        %s404 = ssub.s32 %s12, 2
        // Predicated region
        $region41: #{tpu_custom_call.1} parent=39 // pred_check
          %p405 = pneg %p109
        $region42: #{tpu_custom_call.1} parent=39 // pred_check_branch
          %407 = sbr.rel (%p405) target = $region44
        $region43: #{tpu_custom_call.1} parent=39 // pred_region
          %s408 = sand.u32 %s94, 1
          %s409 = scalar_lea.sflag [#allocation3], %s408
          %s410 = sand.u32 %s94, 1
          %s411 = smul.addr %s410, 32
          %s412 = scalar_lea.vmem [#allocation2], %s411
          %414 = dma.done %s409, 512
        $region44: #{tpu_custom_call.1} parent=39 // pred_fallthru
          _
      $region40: #{tpu_custom_call.1} parent=5 // pred_fallthru
        _
    $region6: #{tpu_custom_call.1} parent=1 // loop_footer
      %s16 = sadd.s32 1, %s12
    $region7: #{tpu_custom_call.1} parent=1 // loop_footer_branch
      %11 = sbr.rel target = $region3
    $region8: #{tpu_custom_call.1} parent=1 // loop_exit
      _
    %415 = vsyncpa [#allocation3], 1
    %s416 = scalar_lea.sflag [#allocation3], 1
    %417 = vsyncpa %s416, 1

</llo_original>
